<compile_context>
chip_gen: v6e
topology: v6e:2x2x1
jax: 0.10.0
libtpu: 0.0.40
codegen_flags: <defaults>
</compile_context>

<pallas_src>
import functools

import jax
import jax.numpy as jnp
from jax.experimental import pallas as pl
from jax.experimental.pallas import tpu as pltpu


def _round_up(x, m):
    return ((x + m - 1) // m) * m


def _pad2d(a, rows, cols):
    r, c = a.shape
    return jnp.pad(a, ((0, rows - r), (0, cols - c)))


def _vae_shapelabels_kernel(n_ref,             # SMEM: (1,) sampling scale n
                            x_ref, eps_ref,    # VMEM: [TB, Xp], [TB, Zp]
                            w1_ref, b1_ref,    # VMEM: [Xp, Hp], [1, Hp]
                            wh_ref, bh_ref,    # VMEM: [Hp, 2*Zp], [1, 2*Zp]
                            z_ref,             # VMEM out: [TB, Zp]
                            *, use_bf16):
    compute_dtype = jnp.bfloat16 if use_bf16 else jnp.float32

    x = x_ref[...].astype(compute_dtype)

    # fc1label + ReLU (single MXU push, f32 accumulation)
    h = jnp.dot(x, w1_ref[...], preferred_element_type=jnp.float32) + b1_ref[...]
    h = jnp.maximum(h, 0.0)

    # Fused heads: one dot produces [mu | log_var] in a single [TB, 2*Zp] tile.
    head = jnp.dot(h.astype(compute_dtype), wh_ref[...],
                   preferred_element_type=jnp.float32) + bh_ref[...]
    zp = head.shape[-1] // 2          # tile-boundary-aligned split (Zp = 128*k)
    mu = head[:, :zp]
    log_var = head[:, zp:]

    # Reparameterization (f32 elementwise tail; exp uses the EUP slot).
    n = n_ref[0]
    std = jnp.exp(0.5 * log_var)
    z_ref[...] = mu + (eps_ref[...] * n) * std


def vae_shapelabels_forward(x_labels, eps, params, n, *,
                            use_bf16=False, tb_max=256):
    """Fused VAEshapelabels.forward. x_labels:[B,X], eps:[B,Z] -> z:[B,Z]."""
    w1, b1, w21, b21, w22, b22 = params
    B, X = x_labels.shape
    H = w1.shape[1]
    Z = w21.shape[1]

    # Lane/sublane-aligned padded dims.
    Xp = _round_up(X, 128)
    Hp = _round_up(H, 128)
    Zp = _round_up(Z, 128)            # per-head padded width (lane-dense out)

    # Batch tiling: sublane-aligned, grid divides padded batch exactly.
    Bp = _round_up(B, 8)
    TB = min(Bp, tb_max)
    Bp = _round_up(Bp, TB)

    w_dtype = jnp.bfloat16 if use_bf16 else jnp.float32

    # Pack + pad parameters (once per call; zero padding keeps math exact).
    w1_p = _pad2d(w1, Xp, Hp).astype(w_dtype)
    b1_p = _pad2d(b1.reshape(1, H), 1, Hp).astype(jnp.float32)
    wh = jnp.zeros((Hp, 2 * Zp), w_dtype)
    wh = wh.at[:H, :Z].set(w21.astype(w_dtype))
    wh = wh.at[:H, Zp:Zp + Z].set(w22.astype(w_dtype))
    bh = jnp.zeros((1, 2 * Zp), jnp.float32)
    bh = bh.at[0, :Z].set(b21.astype(jnp.float32))
    bh = bh.at[0, Zp:Zp + Z].set(b22.astype(jnp.float32))

    x_p = _pad2d(x_labels.astype(jnp.float32), Bp, Xp)
    eps_p = _pad2d(eps.astype(jnp.float32), Bp, Zp)
    n_arr = jnp.asarray([n], dtype=jnp.float32)

    kernel = functools.partial(_vae_shapelabels_kernel, use_bf16=use_bf16)

    z_p = pl.pallas_call(
        kernel,
        grid=(Bp // TB,),
        out_shape=jax.ShapeDtypeStruct((Bp, Zp), jnp.float32),
        in_specs=[
            pl.BlockSpec(memory_space=pltpu.MemorySpace.SMEM),  # n (scalar)
            pl.BlockSpec((TB, Xp), lambda i: (i, 0)),           # x   (streamed)
            pl.BlockSpec((TB, Zp), lambda i: (i, 0)),           # eps (streamed)
            pl.BlockSpec((Xp, Hp), lambda i: (0, 0)),           # w1  (resident)
            pl.BlockSpec((1, Hp), lambda i: (0, 0)),            # b1  (resident)
            pl.BlockSpec((Hp, 2 * Zp), lambda i: (0, 0)),       # wh  (resident)
            pl.BlockSpec((1, 2 * Zp), lambda i: (0, 0)),        # bh  (resident)
        ],
        out_specs=pl.BlockSpec((TB, Zp), lambda i: (i, 0)),     # z (lane-dense)
        compiler_params=pltpu.CompilerParams(
            dimension_semantics=("parallel",)),
    )(n_arr, x_p, eps_p, w1_p, b1_p, wh, bh)

    return z_p[:B, :Z]


def init_params(key, xlabel_dim, hlabel_dim, zlabel_dim):
    """Deterministic nn.Linear-style init. Weights stored as [in, out]."""
    ks = jax.random.split(key, 6)

    def linear(kw, kb, fan_in, fan_out):
        bound = 1.0 / jnp.sqrt(fan_in)
        w = jax.random.uniform(kw, (fan_in, fan_out), jnp.float32, -bound, bound)
        b = jax.random.uniform(kb, (fan_out,), jnp.float32, -bound, bound)
        return w, b

    w1, b1 = linear(ks[0], ks[1], xlabel_dim, hlabel_dim)
    w21, b21 = linear(ks[2], ks[3], hlabel_dim, zlabel_dim)
    w22, b22 = linear(ks[4], ks[5], hlabel_dim, zlabel_dim)
    return (w1, b1, w21, b21, w22, b22)


if __name__ == "__main__":
    xlabel_dim, hlabel_dim, zlabel_dim = 16, 32, 8
    batch = 8
    n_scale = 1.0

    key = jax.random.PRNGKey(0)
    k_params, k_x, k_eps = jax.random.split(key, 3)

    params = init_params(k_params, xlabel_dim, hlabel_dim, zlabel_dim)

    # shape labels (the module just treats them as a float vector)
    x_labels = jax.random.uniform(k_x, (batch, xlabel_dim), jnp.float32)
    # eps ~ N(0, 1): the torch.randn_like draw made explicit & deterministic
    eps = jax.random.normal(k_eps, (batch, zlabel_dim), jnp.float32)

    z = vae_shapelabels_forward(x_labels, eps, params, n_scale)
    z = jax.block_until_ready(z)

    # sanity check against a plain-JAX reference of the same math
    w1, b1, w21, b21, w22, b22 = params
    h_ref = jnp.maximum(x_labels @ w1 + b1, 0.0)
    mu_ref = h_ref @ w21 + b21
    lv_ref = h_ref @ w22 + b22
    z_ref = mu_ref + (eps * n_scale) * jnp.exp(0.5 * lv_ref)
    assert z.shape == z_ref.shape, "shape mismatch vs reference"
    assert jnp.allclose(z, z_ref, atol=1e-5, rtol=1e-5), "mismatch vs reference"

    print("KERNEL_OK")
</pallas_src>

<mosaic_0001>
module attributes {stable_mosaic.version = 11 : i64} {
  func.func @_vae_shapelabels_kernel(%arg0: i32, %arg1: memref<1xf32, #tpu.memory_space<smem>>, %arg2: memref<8x128xf32, #tpu.memory_space<vmem>>, %arg3: memref<8x128xf32, #tpu.memory_space<vmem>>, %arg4: memref<128x128xf32, #tpu.memory_space<vmem>>, %arg5: memref<1x128xf32, #tpu.memory_space<vmem>>, %arg6: memref<128x256xf32, #tpu.memory_space<vmem>>, %arg7: memref<1x256xf32, #tpu.memory_space<vmem>>, %arg8: memref<8x128xf32, #tpu.memory_space<vmem>>) attributes {dimension_semantics = [#tpu.dimension_semantics<parallel>], iteration_bounds = array<i64: 1>, scalar_prefetch = 0 : i64, scratch_operands = 0 : i64, tpu.core_type = #tpu.core_type<tc>, window_params = [{transform_indices = @transform_0, window_bounds = array<i64: 1>}, {transform_indices = @transform_1, window_bounds = array<i64: 8, 128>}, {transform_indices = @transform_2, window_bounds = array<i64: 8, 128>}, {pipeline_mode = #tpu.pipeline_mode<synchronous>, transform_indices = @transform_3, window_bounds = array<i64: 128, 128>}, {pipeline_mode = #tpu.pipeline_mode<synchronous>, transform_indices = @transform_4, window_bounds = array<i64: 1, 128>}, {pipeline_mode = #tpu.pipeline_mode<synchronous>, transform_indices = @transform_5, window_bounds = array<i64: 128, 256>}, {pipeline_mode = #tpu.pipeline_mode<synchronous>, transform_indices = @transform_6, window_bounds = array<i64: 1, 256>}, {transform_indices = @transform_7, window_bounds = array<i64: 8, 128>}]} {
    %c0 = arith.constant 0 : index
    %c0_0 = arith.constant 0 : index
    %0 = vector.load %arg2[%c0, %c0_0] : memref<8x128xf32, #tpu.memory_space<vmem>>, vector<8x128xf32>
    %c0_1 = arith.constant 0 : index
    %c0_2 = arith.constant 0 : index
    %1 = vector.load %arg4[%c0_1, %c0_2] : memref<128x128xf32, #tpu.memory_space<vmem>>, vector<128x128xf32>
    %cst = arith.constant dense<0.000000e+00> : vector<8x128xf32>
    %2 = tpu.matmul %0, %1, %cst {dimension_numbers = #tpu.dot_dimension_numbers<[1], [0], [0], [1], [0, 0, 1, 1], [], []>} : vector<8x128xf32>, vector<128x128xf32>, vector<8x128xf32> -> vector<8x128xf32>
    %c0_3 = arith.constant 0 : index
    %c0_4 = arith.constant 0 : index
    %3 = vector.load %arg5[%c0_3, %c0_4] : memref<1x128xf32, #tpu.memory_space<vmem>>, vector<1x128xf32>
    %4 = vector.broadcast %3 : vector<1x128xf32> to vector<8x128xf32>
    %5 = arith.addf %2, %4 : vector<8x128xf32>
    %cst_5 = arith.constant 0.000000e+00 : f32
    %6 = vector.broadcast %cst_5 : f32 to vector<8x128xf32>
    %7 = arith.maximumf %5, %6 : vector<8x128xf32>
    %c0_6 = arith.constant 0 : index
    %c0_7 = arith.constant 0 : index
    %8 = vector.load %arg6[%c0_6, %c0_7] : memref<128x256xf32, #tpu.memory_space<vmem>>, vector<128x256xf32>
    %cst_8 = arith.constant dense<0.000000e+00> : vector<8x256xf32>
    %9 = tpu.matmul %7, %8, %cst_8 {dimension_numbers = #tpu.dot_dimension_numbers<[1], [0], [0], [1], [0, 0, 1, 1], [], []>} : vector<8x128xf32>, vector<128x256xf32>, vector<8x256xf32> -> vector<8x256xf32>
    %c0_9 = arith.constant 0 : index
    %c0_10 = arith.constant 0 : index
    %10 = vector.load %arg7[%c0_9, %c0_10] : memref<1x256xf32, #tpu.memory_space<vmem>>, vector<1x256xf32>
    %11 = vector.broadcast %10 : vector<1x256xf32> to vector<8x256xf32>
    %12 = arith.addf %9, %11 : vector<8x256xf32>
    %13 = vector.extract_strided_slice %12 {offsets = [0, 0], sizes = [8, 128], strides = [1, 1]} : vector<8x256xf32> to vector<8x128xf32>
    %14 = vector.extract_strided_slice %12 {offsets = [0, 128], sizes = [8, 128], strides = [1, 1]} : vector<8x256xf32> to vector<8x128xf32>
    %c0_11 = arith.constant 0 : index
    %15 = memref.load %arg1[%c0_11] : memref<1xf32, #tpu.memory_space<smem>>
    %cst_12 = arith.constant 5.000000e-01 : f32
    %16 = vector.broadcast %cst_12 : f32 to vector<8x128xf32>
    %17 = arith.mulf %16, %14 : vector<8x128xf32>
    %18 = math.exp %17 : vector<8x128xf32>
    %c0_13 = arith.constant 0 : index
    %c0_14 = arith.constant 0 : index
    %19 = vector.load %arg3[%c0_13, %c0_14] : memref<8x128xf32, #tpu.memory_space<vmem>>, vector<8x128xf32>
    %20 = vector.broadcast %15 : f32 to vector<8x128xf32>
    %21 = arith.mulf %19, %20 : vector<8x128xf32>
    %22 = arith.mulf %21, %18 : vector<8x128xf32>
    %23 = arith.addf %13, %22 : vector<8x128xf32>
    %c0_15 = arith.constant 0 : index
    %c0_16 = arith.constant 0 : index
    %24 = vector.load %arg8[%c0_15, %c0_16] : memref<8x128xf32, #tpu.memory_space<vmem>>, vector<8x128xf32>
    tpu.vector_store %arg8[%c0_15, %c0_16], %23 {strides = array<i32>} : memref<8x128xf32, #tpu.memory_space<vmem>>, vector<8x128xf32>,
    return
  }
  func.func @transform_0(%arg0: i32) -> i32 {
    %c0_i32 = arith.constant 0 : i32
    %c0_i32_0 = arith.constant 0 : i32
    return %c0_i32 : i32
  }
  func.func @transform_1(%arg0: i32) -> (i32, i32) {
    %c0_i32 = arith.constant 0 : i32
    %c0_i32_0 = arith.constant 0 : i32
    return %arg0, %c0_i32 : i32, i32
  }
  func.func @transform_2(%arg0: i32) -> (i32, i32) {
    %c0_i32 = arith.constant 0 : i32
    %c0_i32_0 = arith.constant 0 : i32
    return %arg0, %c0_i32 : i32, i32
  }
  func.func @transform_3(%arg0: i32) -> (i32, i32) {
    %c0_i32 = arith.constant 0 : i32
    %c0_i32_0 = arith.constant 0 : i32
    %c0_i32_1 = arith.constant 0 : i32
    return %c0_i32, %c0_i32_0 : i32, i32
  }
  func.func @transform_4(%arg0: i32) -> (i32, i32) {
    %c0_i32 = arith.constant 0 : i32
    %c0_i32_0 = arith.constant 0 : i32
    %c0_i32_1 = arith.constant 0 : i32
    return %c0_i32, %c0_i32_0 : i32, i32
  }
  func.func @transform_5(%arg0: i32) -> (i32, i32) {
    %c0_i32 = arith.constant 0 : i32
    %c0_i32_0 = arith.constant 0 : i32
    %c0_i32_1 = arith.constant 0 : i32
    return %c0_i32, %c0_i32_0 : i32, i32
  }
  func.func @transform_6(%arg0: i32) -> (i32, i32) {
    %c0_i32 = arith.constant 0 : i32
    %c0_i32_0 = arith.constant 0 : i32
    %c0_i32_1 = arith.constant 0 : i32
    return %c0_i32, %c0_i32_0 : i32, i32
  }
  func.func @transform_7(%arg0: i32) -> (i32, i32) {
    %c0_i32 = arith.constant 0 : i32
    %c0_i32_0 = arith.constant 0 : i32
    return %arg0, %c0_i32 : i32, i32
  }
}

</mosaic_0001>

<llo_original>
// kernel: tpu_custom_call.1
$region0: #{tpu_custom_call.1}
  #allocation0 [shape = 'u32[]', space=smem, size = 0x4, offset = 0x4, fixed_abs, tag = 'smem constant byte address 0x4 - core index']
  #allocation1 [shape = 'u32[144,128]{1,0:T(1,128)}', space=vmem, size = 0x12000, scoped, tag = 'internal scratch']
  #allocation2 [shape = 'f32[1]{0:T(128)S(6)}', space=smem, size = 0x200, scoped, tag = 'scoped memory for tpu_custom_call.1']
  %s0 = inlined_call_operand.<no memory space> [shape: f32[1], index: 0, kind: input, shape index: {}]
  %s1 = inlined_call_operand.hbm [shape: f32[8,128], index: 1, kind: input, shape index: {}]
  %s2 = inlined_call_operand.hbm [shape: f32[8,128], index: 2, kind: input, shape index: {}]
  %s3 = inlined_call_operand.hbm [shape: f32[128,128], index: 3, kind: input, shape index: {}]
  %s4 = inlined_call_operand.vmem [shape: f32[1,128], index: 4, kind: input, shape index: {}]
  %s5 = inlined_call_operand.hbm [shape: f32[128,256], index: 5, kind: input, shape index: {}]
  %s6 = inlined_call_operand.vmem [shape: f32[1,256], index: 6, kind: input, shape index: {}]
  %s7 = inlined_call_operand.hbm [shape: f32[8,128], index: 7, kind: output, shape index: {}]
  %s8 = sld [smem:[#allocation0]]
  $region54: #{tpu_custom_call.1} parent=0
    _
  %s10 = ssub.s32 1, %s8
  %s11 = scalar_select 0, %s10, %s8
  %12 = sst [smem:[#allocation2]] %s0
  $region1: #{tpu_custom_call.1} parent=0
    #allocation3 [shape = 'u8[4096]{0}', space=vmem, size = 0x1000, scoped, tag = 'input window, operand 1, single buffered']
    #allocation4 [shape = 's32[1]{0}', space=sflag, size = 0x4, scoped, tag = 'scoped memory for tpu_custom_call.1']
    #allocation5 [shape = 's32[1]{0}', space=sflag, size = 0x4, scoped, tag = 'scoped memory for tpu_custom_call.1']
    #allocation6 [shape = 'u8[4096]{0}', space=vmem, size = 0x1000, scoped, tag = 'input window, operand 2, single buffered']
    #allocation7 [shape = 's32[1]{0}', space=sflag, size = 0x4, scoped, tag = 'scoped memory for tpu_custom_call.1']
    #allocation8 [shape = 'u8[65536]{0}', space=vmem, size = 0x10000, scoped, tag = 'input window, operand 3, single buffered']
    #allocation9 [shape = 'u8[131072]{0}', space=vmem, size = 0x20000, scoped, tag = 'input window, operand 5, single buffered']
    #allocation10 [shape = 's32[1]{0}', space=sflag, size = 0x4, scoped, tag = 'scoped memory for tpu_custom_call.1']
    #allocation11 [shape = 'u8[4096]{0}', space=vmem, size = 0x1000, scoped, tag = 'output window, operand 0, single buffered']
    %13 = vsyncpa [#allocation4], 0
    %14 = vsyncpa [#allocation7], 0
    %15 = vsyncpa [#allocation10], 0
    %16 = vsyncpa [#allocation5], 0
    // Predicated region
    $region2: #{tpu_custom_call.1} parent=1 // pred_check
      _
    $region3: #{tpu_custom_call.1} parent=1 // pred_check_branch
      %18 = sbr.rel (0) target = $region5
    $region4: #{tpu_custom_call.1} parent=1 // pred_region
      _
    $region5: #{tpu_custom_call.1} parent=1 // pred_fallthru
      _
    // Predicated region
    $region6: #{tpu_custom_call.1} parent=1 // pred_check
      _
    $region7: #{tpu_custom_call.1} parent=1 // pred_check_branch
      %20 = sbr.rel (0) target = $region9
    $region8: #{tpu_custom_call.1} parent=1 // pred_region
      %s22 = ssub.s32 128, 128
      %23 = vsyncadd [#allocation4], %s22
      %s25 = sshll.u32 [#allocation3], 4
      %s26 = int_to_ptr.vmem [resolvable:$true] %s25
      %28 = dma.hbm_to_vmem [thread:$0]  %s1, 128, %s26, [#allocation4]
    $region9: #{tpu_custom_call.1} parent=1 // pred_fallthru
      _
    // Predicated region
    $region10: #{tpu_custom_call.1} parent=1 // pred_check
      _
    $region11: #{tpu_custom_call.1} parent=1 // pred_check_branch
      %30 = sbr.rel (0) target = $region13
    $region12: #{tpu_custom_call.1} parent=1 // pred_region
      %s32 = ssub.s32 128, 128
      %33 = vsyncadd [#allocation7], %s32
      %s35 = sshll.u32 [#allocation6], 4
      %s36 = int_to_ptr.vmem [resolvable:$true] %s35
      %38 = dma.hbm_to_vmem [thread:$0]  %s2, 128, %s36, [#allocation7]
    $region13: #{tpu_custom_call.1} parent=1 // pred_fallthru
      _
    // Predicated region
    $region14: #{tpu_custom_call.1} parent=1 // pred_check
      _
    $region15: #{tpu_custom_call.1} parent=1 // pred_check_branch
      %40 = sbr.rel (0) target = $region17
    $region16: #{tpu_custom_call.1} parent=1 // pred_region
      %s42 = ssub.s32 2048, 2048
      %43 = vsyncadd [#allocation7], %s42
      %s44 = sshll.u32 [#allocation8], 4
      %s45 = int_to_ptr.vmem [resolvable:$true] %s44
      %50 = dma.hbm_to_vmem [thread:$0]  %s3, 2048, %s45, [#allocation7], 128, 128, 8
    $region17: #{tpu_custom_call.1} parent=1 // pred_fallthru
      _
    // Predicated region
    $region18: #{tpu_custom_call.1} parent=1 // pred_check
      _
    $region19: #{tpu_custom_call.1} parent=1 // pred_check_branch
      %52 = sbr.rel (0) target = $region21
    $region20: #{tpu_custom_call.1} parent=1 // pred_region
      _
    $region21: #{tpu_custom_call.1} parent=1 // pred_fallthru
      _
    // Predicated region
    $region22: #{tpu_custom_call.1} parent=1 // pred_check
      _
    $region23: #{tpu_custom_call.1} parent=1 // pred_check_branch
      %54 = sbr.rel (0) target = $region25
    $region24: #{tpu_custom_call.1} parent=1 // pred_region
      %s56 = ssub.s32 4096, 4096
      %57 = vsyncadd [#allocation10], %s56
      %s58 = sshll.u32 [#allocation9], 4
      %s59 = int_to_ptr.vmem [resolvable:$true] %s58
      %64 = dma.hbm_to_vmem [thread:$0]  %s5, 4096, %s59, [#allocation10], 256, 256, 16
    $region25: #{tpu_custom_call.1} parent=1 // pred_fallthru
      _
    // Predicated region
    $region26: #{tpu_custom_call.1} parent=1 // pred_check
      _
    $region27: #{tpu_custom_call.1} parent=1 // pred_check_branch
      %66 = sbr.rel (0) target = $region29
    $region28: #{tpu_custom_call.1} parent=1 // pred_region
      _
    $region29: #{tpu_custom_call.1} parent=1 // pred_fallthru
      _
    // Predicated region
    $region30: #{tpu_custom_call.1} parent=1 // pred_check
      _
    $region31: #{tpu_custom_call.1} parent=1 // pred_check_branch
      %68 = sbr.rel (0) target = $region33
    $region32: #{tpu_custom_call.1} parent=1 // pred_region
      %69 = dma.done [#allocation4], 128
    $region33: #{tpu_custom_call.1} parent=1 // pred_fallthru
      _
    // Predicated region
    $region34: #{tpu_custom_call.1} parent=1 // pred_check
      _
    $region35: #{tpu_custom_call.1} parent=1 // pred_check_branch
      %71 = sbr.rel (0) target = $region37
    $region36: #{tpu_custom_call.1} parent=1 // pred_region
      %72 = dma.done [#allocation7], 128
    $region37: #{tpu_custom_call.1} parent=1 // pred_fallthru
      _
    // Predicated region
    $region38: #{tpu_custom_call.1} parent=1 // pred_check
      _
    $region39: #{tpu_custom_call.1} parent=1 // pred_check_branch
      %74 = sbr.rel (0) target = $region41
    $region40: #{tpu_custom_call.1} parent=1 // pred_region
      %75 = dma.done [#allocation7], 2048
    $region41: #{tpu_custom_call.1} parent=1 // pred_fallthru
      _
    // Predicated region
    $region42: #{tpu_custom_call.1} parent=1 // pred_check
      _
    $region43: #{tpu_custom_call.1} parent=1 // pred_check_branch
      %77 = sbr.rel (0) target = $region45
    $region44: #{tpu_custom_call.1} parent=1 // pred_region
      %78 = dma.done [#allocation10], 4096
    $region45: #{tpu_custom_call.1} parent=1 // pred_fallthru
      _
    %v79 = vld [vmem:[#allocation3] sm:$0xff]
    %v80 = vld [vmem:[#allocation8] sm:$0xff]
    %v81 = vld [vmem:[#allocation8 + $0x8] sm:$0xff]
    %v82 = vld [vmem:[#allocation8 + $0x10] sm:$0xff]
    %v83 = vld [vmem:[#allocation8 + $0x18] sm:$0xff]
    %v84 = vld [vmem:[#allocation8 + $0x20] sm:$0xff]
    %v85 = vld [vmem:[#allocation8 + $0x28] sm:$0xff]
    %v86 = vld [vmem:[#allocation8 + $0x30] sm:$0xff]
    %v87 = vld [vmem:[#allocation8 + $0x38] sm:$0xff]
    %v88 = vld [vmem:[#allocation8 + $0x40] sm:$0xff]
    %v89 = vld [vmem:[#allocation8 + $0x48] sm:$0xff]
    %v90 = vld [vmem:[#allocation8 + $0x50] sm:$0xff]
    %v91 = vld [vmem:[#allocation8 + $0x58] sm:$0xff]
    %v92 = vld [vmem:[#allocation8 + $0x60] sm:$0xff]
    %v93 = vld [vmem:[#allocation8 + $0x68] sm:$0xff]
    %v94 = vld [vmem:[#allocation8 + $0x70] sm:$0xff]
    %v95 = vld [vmem:[#allocation8 + $0x78] sm:$0xff]
    %v96 = vld [vmem:[%s4] sm:$0x1]
    %v98 = vlaneseq
    %v99 = vshrl.u32 %v98, 7
    %v100 = vsub.s32 0, %v99
    %v101 = vrot.slane %v96, %v100
    %103 = vmatprep.subr.mxu0 0.0
    %104 = vmatpush1.msra.mxu0 %v95
    %105 = vmatprep.subr.mxu0 0.0
    %106 = vmatpush1.msra.mxu0 %v94
    %107 = vmatprep.subr.mxu0 0.0
    %108 = vmatpush1.msra.mxu0 %v93
    %109 = vmatprep.subr.mxu0 0.0
    %110 = vmatpush1.msra.mxu0 %v92
    %111 = vmatprep.subr.mxu0 0.0
    %112 = vmatpush1.msra.mxu0 %v91
    %113 = vmatprep.subr.mxu0 0.0
    %114 = vmatpush1.msra.mxu0 %v90
    %115 = vmatprep.subr.mxu0 0.0
    %116 = vmatpush1.msra.mxu0 %v89
    %117 = vmatprep.subr.mxu0 0.0
    %118 = vmatpush1.msra.mxu0 %v88
    %119 = vmatprep.subr.mxu0 0.0
    %120 = vmatpush1.msra.mxu0 %v87
    %121 = vmatprep.subr.mxu0 0.0
    %122 = vmatpush1.msra.mxu0 %v86
    %123 = vmatprep.subr.mxu0 0.0
    %124 = vmatpush1.msra.mxu0 %v85
    %125 = vmatprep.subr.mxu0 0.0
    %126 = vmatpush1.msra.mxu0 %v84
    %127 = vmatprep.subr.mxu0 0.0
    %128 = vmatpush1.msra.mxu0 %v83
    %129 = vmatprep.subr.mxu0 0.0
    %130 = vmatpush1.msra.mxu0 %v82
    %131 = vmatprep.subr.mxu0 0.0
    %132 = vmatpush1.msra.mxu0 %v81
    %133 = vmatprep.subr.mxu0 0.0
    %134 = vmatpush1.msra.mxu0 %v80
    %135 = vmatprep.subr.mxu0 0.0
    %136 = vmatpush2.msra.mxu0 0.0
    %137 = vmatprep.subr.mxu0 0.0
    %138 = vmatpush2.msra.mxu0 0.0
    %139 = vmatprep.subr.mxu0 0.0
    %140 = vmatpush2.msra.mxu0 0.0
    %141 = vmatprep.subr.mxu0 0.0
    %142 = vmatpush2.msra.mxu0 0.0
    %143 = vmatprep.subr.mxu0 0.0
    %144 = vmatpush2.msra.mxu0 0.0
    %145 = vmatprep.subr.mxu0 0.0
    %146 = vmatpush2.msra.mxu0 0.0
    %147 = vmatprep.subr.mxu0 0.0
    %148 = vmatpush2.msra.mxu0 0.0
    %149 = vmatprep.subr.mxu0 0.0
    %150 = vmatpush2.msra.mxu0 0.0
    %151 = vmatprep.subr.mxu0 0.0
    %152 = vmatpush2.msra.mxu0 0.0
    %153 = vmatprep.subr.mxu0 0.0
    %154 = vmatpush2.msra.mxu0 0.0
    %155 = vmatprep.subr.mxu0 0.0
    %156 = vmatpush2.msra.mxu0 0.0
    %157 = vmatprep.subr.mxu0 0.0
    %158 = vmatpush2.msra.mxu0 0.0
    %159 = vmatprep.subr.mxu0 0.0
    %160 = vmatpush2.msra.mxu0 0.0
    %161 = vmatprep.subr.mxu0 0.0
    %162 = vmatpush2.msra.mxu0 0.0
    %163 = vmatprep.subr.mxu0 0.0
    %164 = vmatpush2.msra.mxu0 0.0
    %165 = vmatprep.subr.mxu0 0.0
    %166 = vmatpush2.msra.mxu0 0.0
    %167 = vmatprep.mubr.f32.mxu0 0.0
    %168 = vmatmul.mubr.f32.gmra.mxu0 %v79
    %v169 = vpop.f32.mrf.mxu0
    %v170 = vadd.f32 %v101, %v169
    %v171 = vpop.f32.mrf.mxu0
    %172 = vdwg.mxu0
    %v173 = vmax.f32 %v170, 0.0
    %v174 = vld [vmem:[#allocation9] sm:$0xff]
    %v175 = vld [vmem:[#allocation9 + $0x8] sm:$0xff]
    %v176 = vld [vmem:[#allocation9 + $0x10] sm:$0xff]
    %v177 = vld [vmem:[#allocation9 + $0x18] sm:$0xff]
    %v178 = vld [vmem:[#allocation9 + $0x20] sm:$0xff]
    %v179 = vld [vmem:[#allocation9 + $0x28] sm:$0xff]
    %v180 = vld [vmem:[#allocation9 + $0x30] sm:$0xff]
    %v181 = vld [vmem:[#allocation9 + $0x38] sm:$0xff]
    %v182 = vld [vmem:[#allocation9 + $0x40] sm:$0xff]
    %v183 = vld [vmem:[#allocation9 + $0x48] sm:$0xff]
    %v184 = vld [vmem:[#allocation9 + $0x50] sm:$0xff]
    %v185 = vld [vmem:[#allocation9 + $0x58] sm:$0xff]
    %v186 = vld [vmem:[#allocation9 + $0x60] sm:$0xff]
    %v187 = vld [vmem:[#allocation9 + $0x68] sm:$0xff]
    %v188 = vld [vmem:[#allocation9 + $0x70] sm:$0xff]
    %v189 = vld [vmem:[#allocation9 + $0x78] sm:$0xff]
    %v190 = vld [vmem:[#allocation9 + $0x80] sm:$0xff]
    %v191 = vld [vmem:[#allocation9 + $0x88] sm:$0xff]
    %v192 = vld [vmem:[#allocation9 + $0x90] sm:$0xff]
    %v193 = vld [vmem:[#allocation9 + $0x98] sm:$0xff]
    %v194 = vld [vmem:[#allocation9 + $0xa0] sm:$0xff]
    %v195 = vld [vmem:[#allocation9 + $0xa8] sm:$0xff]
    %v196 = vld [vmem:[#allocation9 + $0xb0] sm:$0xff]
    %v197 = vld [vmem:[#allocation9 + $0xb8] sm:$0xff]
    %v198 = vld [vmem:[#allocation9 + $0xc0] sm:$0xff]
    %v199 = vld [vmem:[#allocation9 + $0xc8] sm:$0xff]
    %v200 = vld [vmem:[#allocation9 + $0xd0] sm:$0xff]
    %v201 = vld [vmem:[#allocation9 + $0xd8] sm:$0xff]
    %v202 = vld [vmem:[#allocation9 + $0xe0] sm:$0xff]
    %v203 = vld [vmem:[#allocation9 + $0xe8] sm:$0xff]
    %v204 = vld [vmem:[#allocation9 + $0xf0] sm:$0xff]
    %v205 = vld [vmem:[#allocation9 + $0xf8] sm:$0xff]
    %v206 = vld [vmem:[%s6] sm:$0x3]
    %v208 = vlaneseq
    %v209 = vshrl.u32 %v208, 7
    %v210 = vsub.s32 0, %v209
    %v211 = vrot.slane %v206, %v210
    %v212 = vlaneseq
    %v213 = vshrl.u32 %v212, 7
    %v214 = vsub.s32 1, %v213
    %v215 = vrot.slane %v206, %v214
    %218 = vmatprep.subr.mxu0 %v205
    %219 = vmatpush1.msra.mxu0 %v204
    %220 = vmatprep.subr.mxu0 %v203
    %221 = vmatpush1.msra.mxu0 %v202
    %222 = vmatprep.subr.mxu0 %v201
    %223 = vmatpush1.msra.mxu0 %v200
    %224 = vmatprep.subr.mxu0 %v199
    %225 = vmatpush1.msra.mxu0 %v198
    %226 = vmatprep.subr.mxu0 %v197
    %227 = vmatpush1.msra.mxu0 %v196
    %228 = vmatprep.subr.mxu0 %v195
    %229 = vmatpush1.msra.mxu0 %v194
    %230 = vmatprep.subr.mxu0 %v193
    %231 = vmatpush1.msra.mxu0 %v192
    %232 = vmatprep.subr.mxu0 %v191
    %233 = vmatpush1.msra.mxu0 %v190
    %234 = vmatprep.subr.mxu0 %v189
    %235 = vmatpush1.msra.mxu0 %v188
    %236 = vmatprep.subr.mxu0 %v187
    %237 = vmatpush1.msra.mxu0 %v186
    %238 = vmatprep.subr.mxu0 %v185
    %239 = vmatpush1.msra.mxu0 %v184
    %240 = vmatprep.subr.mxu0 %v183
    %241 = vmatpush1.msra.mxu0 %v182
    %242 = vmatprep.subr.mxu0 %v181
    %243 = vmatpush1.msra.mxu0 %v180
    %244 = vmatprep.subr.mxu0 %v179
    %245 = vmatpush1.msra.mxu0 %v178
    %246 = vmatprep.subr.mxu0 %v177
    %247 = vmatpush1.msra.mxu0 %v176
    %248 = vmatprep.subr.mxu0 %v175
    %249 = vmatpush1.msra.mxu0 %v174
    %250 = vmatprep.subr.mxu0 0.0
    %251 = vmatpush2.msra.mxu0 0.0
    %252 = vmatprep.subr.mxu0 0.0
    %253 = vmatpush2.msra.mxu0 0.0
    %254 = vmatprep.subr.mxu0 0.0
    %255 = vmatpush2.msra.mxu0 0.0
    %256 = vmatprep.subr.mxu0 0.0
    %257 = vmatpush2.msra.mxu0 0.0
    %258 = vmatprep.subr.mxu0 0.0
    %259 = vmatpush2.msra.mxu0 0.0
    %260 = vmatprep.subr.mxu0 0.0
    %261 = vmatpush2.msra.mxu0 0.0
    %262 = vmatprep.subr.mxu0 0.0
    %263 = vmatpush2.msra.mxu0 0.0
    %264 = vmatprep.subr.mxu0 0.0
    %265 = vmatpush2.msra.mxu0 0.0
    %266 = vmatprep.subr.mxu0 0.0
    %267 = vmatpush2.msra.mxu0 0.0
    %268 = vmatprep.subr.mxu0 0.0
    %269 = vmatpush2.msra.mxu0 0.0
    %270 = vmatprep.subr.mxu0 0.0
    %271 = vmatpush2.msra.mxu0 0.0
    %272 = vmatprep.subr.mxu0 0.0
    %273 = vmatpush2.msra.mxu0 0.0
    %274 = vmatprep.subr.mxu0 0.0
    %275 = vmatpush2.msra.mxu0 0.0
    %276 = vmatprep.subr.mxu0 0.0
    %277 = vmatpush2.msra.mxu0 0.0
    %278 = vmatprep.subr.mxu0 0.0
    %279 = vmatpush2.msra.mxu0 0.0
    %280 = vmatprep.subr.mxu0 0.0
    %281 = vmatpush2.msra.mxu0 0.0
    %282 = vmatprep.mubr.f32.mxu0 0.0
    %283 = vmatmul.mubr.f32.gmra.mxu0 %v173
    %v284 = vpop.f32.mrf.mxu0
    %v285 = vadd.f32 %v211, %v284
    %v286 = vpop.f32.mrf.mxu0
    %v287 = vadd.f32 %v215, %v286
    %288 = vdwg.mxu0
    %s289 = sld [smem:[#allocation2]]
    %v290 = vmul.f32 %v287, 0.5
    %v291 = vmul.f32 %v290, 1.442695
    %v292 = vpow.pop %v291
    %v293 = vld [vmem:[#allocation6] sm:$0xff]
    %v294 = vstv %s289
    %v295 = vmul.f32 %v293, %v294
    %v296 = vmul.f32 %v295, %v292
    %v297 = vadd.f32 %v285, %v296
    %298 = vst [vmem:[#allocation11] sm:$0xff] %v297
    // Predicated region
    $region46: #{tpu_custom_call.1} parent=1 // pred_check
      _
    $region47: #{tpu_custom_call.1} parent=1 // pred_check_branch
      %300 = sbr.rel (0) target = $region49
    $region48: #{tpu_custom_call.1} parent=1 // pred_region
      %s302 = ssub.s32 128, 128
      %303 = vsyncadd [#allocation5], %s302
      %s305 = sshll.u32 [#allocation11], 4
      %s306 = int_to_ptr.vmem [resolvable:$true] %s305
      %308 = dma.vmem_to_hbm [thread:$0]  %s306, 128, %s7, [#allocation5]
    $region49: #{tpu_custom_call.1} parent=1 // pred_fallthru
      _
    // Predicated region
    $region50: #{tpu_custom_call.1} parent=1 // pred_check
      _
    $region51: #{tpu_custom_call.1} parent=1 // pred_check_branch
      %310 = sbr.rel (0) target = $region53
    $region52: #{tpu_custom_call.1} parent=1 // pred_region
      %311 = dma.done [#allocation5], 128
    $region53: #{tpu_custom_call.1} parent=1 // pred_fallthru
      _
    %312 = vsyncpa [#allocation4], 1
    %313 = vsyncpa [#allocation7], 1
    %314 = vsyncpa [#allocation10], 1
    %315 = vsyncpa [#allocation5], 1

</llo_original>
